<compile_context>
chip_gen: v5e
topology: v5e:2x2
jax: 0.10.0
libtpu: 0.0.40
codegen_flags: <defaults>
</compile_context>

<pallas_src>
import jax
import jax.numpy as jnp
from jax.experimental import pallas as pl
from jax.experimental.pallas import tpu as pltpu


def _i32_const(v):
    """Python int (possibly >= 2^31) -> wrapped signed int32 jnp constant."""
    v &= 0xFFFFFFFF
    if v >= (1 << 31):
        v -= 1 << 32
    return jnp.int32(v)


def _uniform_bits31(gid, seed):
    """Stateless per-element hash -> 31 uniform bits (int32, non-negative).

    lowbias32-style mixer done entirely in wrapping int32 arithmetic; logical
    right shifts are emulated as arithmetic shift + mask so everything lowers
    on both Mosaic (TPU) and the CPU interpreter.
    """
    x = gid + seed * _i32_const(0x9E3779B9)
    x = x ^ ((x >> 16) & jnp.int32(0xFFFF))
    x = x * _i32_const(0x7FEB352D)
    x = x ^ ((x >> 15) & jnp.int32(0x1FFFF))
    x = x * _i32_const(0x846CA68B)
    x = x ^ ((x >> 16) & jnp.int32(0xFFFF))
    return x & jnp.int32(0x7FFFFFFF)


def _make_kernel(dropout_p, eps, hidden_size, has_residual, write_x, z_dtype, x_dtype):
    inv_h = 1.0 / float(hidden_size)

    def kernel(seed_ref, *refs):
        idx = 0
        x0_ref = refs[idx]; idx += 1
        if has_residual:
            res_ref = refs[idx]; idx += 1
        gamma_ref = refs[idx]; idx += 1
        z_ref = refs[idx]; idx += 1
        if write_x:
            x_ref = refs[idx]; idx += 1

        x = x0_ref[...].astype(jnp.float32)

        if dropout_p > 0.0:
            # Stateless counter-based dropout mask: hash(global element id, seed).
            # TODO(synk): dropout mask (dmask) is not returned, so a matching backward
            #             pass cannot be reconstructed from this forward alone.
            block_rows = x.shape[0]
            row_local = jax.lax.broadcasted_iota(jnp.int32, x.shape, 0)
            col = jax.lax.broadcasted_iota(jnp.int32, x.shape, 1)
            row_global = row_local + pl.program_id(0) * jnp.int32(block_rows)
            gid = row_global * jnp.int32(hidden_size) + col
            bits31 = _uniform_bits31(gid, seed_ref[0])
            thresh = min(int(round(dropout_p * 2147483648.0)), 2147483647)
            keep = bits31 >= jnp.int32(thresh)
            x = jnp.where(keep, x * (1.0 / (1.0 - dropout_p)), 0.0)

        if has_residual:
            x = x + res_ref[...].astype(jnp.float32)

        # RMSNorm: reduce on XLU, rsqrt on EUP, fold 1/H into the rsqrt argument.
        ss = jnp.sum(x * x, axis=-1, keepdims=True)
        rsigma = jax.lax.rsqrt(ss * inv_h + eps)
        z = (x * rsigma) * gamma_ref[...].astype(jnp.float32)

        z_ref[...] = z.astype(z_dtype)
        if write_x:
            x_ref[...] = x.astype(x_dtype)

    return kernel


def _pick_block_rows(rows, hidden, itemsizes,
                     vmem_budget_bytes=20 * 1024 * 1024, max_rows=1024):
    """Largest row tile whose double-buffered I/O footprint fits the VMEM budget."""
    bytes_per_row = hidden * sum(itemsizes)
    br = max(1, vmem_budget_bytes // (2 * bytes_per_row))   # 2x for double buffering
    br = min(br, max_rows, rows)
    # Keep at least 2 grid steps when possible so v7x can shard across its 2 TCs.
    half = pl.cdiv(rows, 2)
    if br > half:
        br = half
    # Sublane packing: 8 rows/vreg for 32-bit, 16 for bf16, 32 for int8/fp8.
    min_item = max(1, min(itemsizes))
    row_align = 8 * max(1, 4 // min_item)
    br = max(row_align, (br // row_align) * row_align)
    return int(br)


def dropout_add_rms_norm_pallas(x0, residual, weight, dropout_p, eps,
                                prenorm=False, residual_in_fp32=False,
                                seed=0, block_rows=None):
    """x0: (..., H); residual: same shape or None; weight: (H,)."""
    orig_shape = x0.shape
    H = weight.shape[0]
    x0m = x0.reshape(-1, H)
    rows = x0m.shape[0]
    has_residual = residual is not None
    dropout_p = float(dropout_p)

    z_dtype = x0.dtype
    # residual_in_fp32 only has an effect if residual is None (matches flash-attn).
    if has_residual:
        x_dtype = residual.dtype
    elif residual_in_fp32:
        x_dtype = jnp.float32
    else:
        x_dtype = x0.dtype

    # Fast path: the pre-norm residual is exactly x0 -> skip a redundant HBM write.
    x_is_x0 = (prenorm and dropout_p == 0.0 and not has_residual
               and jnp.dtype(x_dtype) == jnp.dtype(x0.dtype))
    write_x = prenorm and not x_is_x0

    itemsizes = [jnp.dtype(x0.dtype).itemsize, jnp.dtype(z_dtype).itemsize]
    if has_residual:
        itemsizes.append(jnp.dtype(residual.dtype).itemsize)
    if write_x:
        itemsizes.append(jnp.dtype(x_dtype).itemsize)

    if block_rows is None:
        block_rows = _pick_block_rows(rows, H, itemsizes)
    n_blocks = pl.cdiv(rows, block_rows)

    kernel = _make_kernel(dropout_p, float(eps), H, has_residual, write_x,
                          z_dtype, x_dtype)

    gamma2d = weight.reshape(1, H)
    seed_arr = jnp.asarray([seed], dtype=jnp.int32)

    row_spec = pl.BlockSpec((block_rows, H), lambda i, *_: (i, 0))
    gamma_spec = pl.BlockSpec((1, H), lambda i, *_: (0, 0))  # resident across steps

    in_specs = [row_spec]
    args = [x0m]
    if has_residual:
        in_specs.append(row_spec)
        args.append(residual.reshape(-1, H))
    in_specs.append(gamma_spec)
    args.append(gamma2d)

    out_shapes = [jax.ShapeDtypeStruct((rows, H), z_dtype)]
    out_specs = [row_spec]
    if write_x:
        out_shapes.append(jax.ShapeDtypeStruct((rows, H), x_dtype))
        out_specs.append(row_spec)

    outs = pl.pallas_call(
        kernel,
        out_shape=tuple(out_shapes),
        grid_spec=pltpu.PrefetchScalarGridSpec(
            num_scalar_prefetch=1,
            grid=(n_blocks,),
            in_specs=in_specs,
            out_specs=tuple(out_specs),
        ),
        compiler_params=pltpu.CompilerParams(
            dimension_semantics=("parallel",),
            vmem_limit_bytes=32 * 1024 * 1024,
        ),
    )(seed_arr, *args)

    z = outs[0].reshape(orig_shape)
    if not prenorm:
        return z
    if x_is_x0:
        return z, x0
    return z, outs[1].reshape(orig_shape)


class DropoutAddRMSNorm:
    """JAX/Pallas port of the PyTorch DropoutAddRMSNorm module (forward only)."""

    def __init__(self, hidden_size, prenorm=False, p=0.0, eps=1e-5,
                 residual_in_fp32=False, dtype=jnp.float32):
        self.prenorm = prenorm
        self.p = p
        self.eps = eps
        self.residual_in_fp32 = residual_in_fp32
        # reset_parameters(): init.ones_(weight); bias is None (RMSNorm)
        self.weight = jnp.ones((hidden_size,), dtype=dtype)
        self.training = True

    def __call__(self, x0, residual=None, seed=0):
        dropout_p = self.p if self.training else 0.0
        return dropout_add_rms_norm_pallas(
            x0, residual, self.weight, dropout_p, self.eps,
            prenorm=self.prenorm, residual_in_fp32=self.residual_in_fp32,
            seed=seed)


def _reference(x0, residual, weight, eps, prenorm, x_dtype=None):
    x = x0.astype(jnp.float32)
    if residual is not None:
        x = x + residual.astype(jnp.float32)
    rsigma = jax.lax.rsqrt(jnp.mean(x * x, axis=-1, keepdims=True) + eps)
    z = (x * rsigma * weight.astype(jnp.float32)).astype(x0.dtype)
    if not prenorm:
        return z
    if x_dtype is None:
        x_dtype = residual.dtype if residual is not None else x0.dtype
    return z, x.astype(x_dtype)


if __name__ == "__main__":
    key = jax.random.PRNGKey(0)
    k1, k2, k3, k4 = jax.random.split(key, 4)

    batch, seq, hidden = 2, 8, 128
    x0 = jax.random.normal(k1, (batch, seq, hidden), dtype=jnp.float32)
    residual = jax.random.normal(k2, (batch, seq, hidden), dtype=jnp.float32)

    # 1) prenorm + residual, p=0 (both outputs, multi-step grid).
    mod = DropoutAddRMSNorm(hidden, prenorm=True, p=0.0, eps=1e-5)
    z, x_pre = mod(x0, residual)
    jax.block_until_ready((z, x_pre))
    z_ref, x_ref = _reference(x0, residual, mod.weight, mod.eps, prenorm=True)
    assert z.shape == x0.shape and x_pre.shape == x0.shape
    assert jnp.allclose(z, z_ref, atol=1e-5, rtol=1e-5)
    assert jnp.allclose(x_pre, x_ref, atol=1e-5, rtol=1e-5)

    # 2) no-residual, non-prenorm path (single output, no x writeback).
    mod2 = DropoutAddRMSNorm(hidden, prenorm=False, p=0.0, eps=1e-5)
    z2 = mod2(x0, None)
    jax.block_until_ready(z2)
    z2_ref = _reference(x0, None, mod2.weight, mod2.eps, prenorm=False)
    assert jnp.allclose(z2, z2_ref, atol=1e-5, rtol=1e-5)

    # 3) rows not divisible by the tile (cdiv grid + masked partial block).
    x0_odd = jax.random.normal(k3, (3, 5, hidden), dtype=jnp.float32)
    res_odd = jax.random.normal(k4, (3, 5, hidden), dtype=jnp.float32)
    z3, x3 = mod(x0_odd, res_odd)
    jax.block_until_ready((z3, x3))
    z3_ref, x3_ref = _reference(x0_odd, res_odd, mod.weight, mod.eps, prenorm=True)
    assert jnp.allclose(z3, z3_ref, atol=1e-5, rtol=1e-5)
    assert jnp.allclose(x3, x3_ref, atol=1e-5, rtol=1e-5)

    # 4) dropout smoke test (p=0.5): exercises the in-kernel stateless PRNG path,
    #    roughly half of the entries should be dropped.
    mod4 = DropoutAddRMSNorm(hidden, prenorm=True, p=0.5, eps=1e-5)
    z4, x4 = mod4(x0, None, seed=42)
    jax.block_until_ready((z4, x4))
    assert bool(jnp.all(jnp.isfinite(z4))) and bool(jnp.all(jnp.isfinite(x4)))
    drop_frac = float(jnp.mean((x4 == 0.0).astype(jnp.float32)))
    assert 0.3 < drop_frac < 0.7, drop_frac

    print("KERNEL_OK")
</pallas_src>

<mosaic_0001>
module attributes {stable_mosaic.version = 11 : i64} {
  func.func @kernel(%arg0: i32, %arg1: memref<1xi32, #tpu.memory_space<smem>>, %arg2: memref<8x128xf32, #tpu.memory_space<vmem>>, %arg3: memref<8x128xf32, #tpu.memory_space<vmem>>, %arg4: memref<1x128xf32, #tpu.memory_space<vmem>>, %arg5: memref<8x128xf32, #tpu.memory_space<vmem>>, %arg6: memref<8x128xf32, #tpu.memory_space<vmem>>) attributes {dimension_semantics = [#tpu.dimension_semantics<parallel>], iteration_bounds = array<i64: 2>, scalar_prefetch = 1 : i64, scratch_operands = 0 : i64, tpu.core_type = #tpu.core_type<tc>, window_params = [{transform_indices = @transform_0, window_bounds = array<i64: 8, 128>}, {transform_indices = @transform_1, window_bounds = array<i64: 8, 128>}, {pipeline_mode = #tpu.pipeline_mode<synchronous>, transform_indices = @transform_2, window_bounds = array<i64: 1, 128>}, {transform_indices = @transform_3, window_bounds = array<i64: 8, 128>}, {transform_indices = @transform_4, window_bounds = array<i64: 8, 128>}]} {
    %c0 = arith.constant 0 : index
    %c0_0 = arith.constant 0 : index
    %0 = vector.load %arg2[%c0, %c0_0] : memref<8x128xf32, #tpu.memory_space<vmem>>, vector<8x128xf32>
    %c0_1 = arith.constant 0 : index
    %c0_2 = arith.constant 0 : index
    %1 = vector.load %arg3[%c0_1, %c0_2] : memref<8x128xf32, #tpu.memory_space<vmem>>, vector<8x128xf32>
    %2 = arith.addf %0, %1 : vector<8x128xf32>
    %3 = arith.mulf %2, %2 : vector<8x128xf32>
    %cst = arith.constant dense<0.000000e+00> : vector<8xf32>
    %4 = vector.multi_reduction <add>, %3, %cst [1] : vector<8x128xf32> to vector<8xf32>
    %5 = vector.shape_cast %4 : vector<8xf32> to vector<8x1xf32>
    %cst_3 = arith.constant 7.812500e-03 : f32
    %6 = vector.broadcast %cst_3 : f32 to vector<8x1xf32>
    %7 = arith.mulf %5, %6 : vector<8x1xf32>
    %cst_4 = arith.constant 9.99999974E-6 : f32
    %8 = vector.broadcast %cst_4 : f32 to vector<8x1xf32>
    %9 = arith.addf %7, %8 : vector<8x1xf32>
    %10 = math.rsqrt %9 : vector<8x1xf32>
    %11 = vector.broadcast %10 : vector<8x1xf32> to vector<8x128xf32>
    %12 = arith.mulf %2, %11 : vector<8x128xf32>
    %c0_5 = arith.constant 0 : index
    %c0_6 = arith.constant 0 : index
    %13 = vector.load %arg4[%c0_5, %c0_6] : memref<1x128xf32, #tpu.memory_space<vmem>>, vector<1x128xf32>
    %14 = vector.broadcast %13 : vector<1x128xf32> to vector<8x128xf32>
    %15 = arith.mulf %12, %14 : vector<8x128xf32>
    %c0_7 = arith.constant 0 : index
    %c0_8 = arith.constant 0 : index
    %16 = vector.load %arg5[%c0_7, %c0_8] : memref<8x128xf32, #tpu.memory_space<vmem>>, vector<8x128xf32>
    tpu.vector_store %arg5[%c0_7, %c0_8], %15 {strides = array<i32>} : memref<8x128xf32, #tpu.memory_space<vmem>>, vector<8x128xf32>,
    %c0_9 = arith.constant 0 : index
    %c0_10 = arith.constant 0 : index
    %17 = vector.load %arg6[%c0_9, %c0_10] : memref<8x128xf32, #tpu.memory_space<vmem>>, vector<8x128xf32>
    tpu.vector_store %arg6[%c0_9, %c0_10], %2 {strides = array<i32>} : memref<8x128xf32, #tpu.memory_space<vmem>>, vector<8x128xf32>,
    return
  }
  func.func @transform_0(%arg0: i32, %arg1: memref<1xi32, #tpu.memory_space<smem>>) -> (i32, i32) {
    %c0_i32 = arith.constant 0 : i32
    %c0_i32_0 = arith.constant 0 : i32
    return %arg0, %c0_i32 : i32, i32
  }
  func.func @transform_1(%arg0: i32, %arg1: memref<1xi32, #tpu.memory_space<smem>>) -> (i32, i32) {
    %c0_i32 = arith.constant 0 : i32
    %c0_i32_0 = arith.constant 0 : i32
    return %arg0, %c0_i32 : i32, i32
  }
  func.func @transform_2(%arg0: i32, %arg1: memref<1xi32, #tpu.memory_space<smem>>) -> (i32, i32) {
    %c0_i32 = arith.constant 0 : i32
    %c0_i32_0 = arith.constant 0 : i32
    %c0_i32_1 = arith.constant 0 : i32
    return %c0_i32, %c0_i32_0 : i32, i32
  }
  func.func @transform_3(%arg0: i32, %arg1: memref<1xi32, #tpu.memory_space<smem>>) -> (i32, i32) {
    %c0_i32 = arith.constant 0 : i32
    %c0_i32_0 = arith.constant 0 : i32
    return %arg0, %c0_i32 : i32, i32
  }
  func.func @transform_4(%arg0: i32, %arg1: memref<1xi32, #tpu.memory_space<smem>>) -> (i32, i32) {
    %c0_i32 = arith.constant 0 : i32
    %c0_i32_0 = arith.constant 0 : i32
    return %arg0, %c0_i32 : i32, i32
  }
}

</mosaic_0001>

<llo_original>
// kernel: tpu_custom_call.1
$region0: #{tpu_custom_call.1}
  #allocation0 [shape = 'u32[]', space=smem, size = 0x4, offset = 0x4, fixed_abs, tag = 'smem constant byte address 0x4 - core index']
  #allocation1 [shape = 'u32[72,128]{1,0:T(1,128)}', space=vmem, size = 0x9000, scoped, tag = 'internal scratch']
  #allocation2 [shape = 's32[1]{0}', space=sflag, size = 0x4, scoped, tag = 'scoped memory for tpu_custom_call.1']
  #allocation3 [shape = 's32[1]{0:T(128)S(6)}', space=smem, size = 0x200, scoped, tag = 'prefetched SMEM operand 0']
  %s0 = inlined_call_operand.<no memory space> [shape: s32[1], index: 0, kind: input, shape index: {}]
  %s1 = inlined_call_operand.hbm [shape: f32[16,128], index: 1, kind: input, shape index: {}]
  %s2 = inlined_call_operand.hbm [shape: f32[16,128], index: 2, kind: input, shape index: {}]
  %s3 = inlined_call_operand.vmem [shape: f32[1,128], index: 3, kind: input, shape index: {}]
  %s4 = inlined_call_operand.hbm [shape: f32[16,128], index: 4, kind: output, shape index: {0}]
  %s5 = inlined_call_operand.hbm [shape: f32[16,128], index: 5, kind: output, shape index: {1}]
  %6 = xla_tuple %s4, %s5
  %s7 = sld [smem:[#allocation0]]
  $region61: #{tpu_custom_call.1} parent=0
    _
  %s9 = ssub.s32 1, %s7
  %s10 = scalar_select 0, %s9, %s7
  %11 = sst [smem:[#allocation3]] %s0
  $region1: #{tpu_custom_call.1} parent=0
    #allocation4 [shape = 'u8[8192]{0}', space=vmem, size = 0x2000, scoped, tag = 'input window, operand 1']
    #allocation5 [shape = 's32[2]{0}', space=sflag, size = 0x8, scoped, tag = 'scoped memory for tpu_custom_call.1']
    #allocation6 [shape = 's32[2]{0}', space=sflag, size = 0x8, scoped, tag = 'scoped memory for tpu_custom_call.1']
    #allocation7 [shape = 'u8[8192]{0}', space=vmem, size = 0x2000, scoped, tag = 'input window, operand 2']
    #allocation8 [shape = 's32[2]{0}', space=sflag, size = 0x8, scoped, tag = 'scoped memory for tpu_custom_call.1']
    #allocation9 [shape = 'u8[8192]{0}', space=vmem, size = 0x2000, scoped, tag = 'output window, operand 0']
    #allocation10 [shape = 'u8[8192]{0}', space=vmem, size = 0x2000, scoped, tag = 'output window, operand 1']
    #allocation11 [shape = 's32[2]{0}', space=sflag, size = 0x8, scoped, tag = 'scoped memory for tpu_custom_call.1']
    %12 = vsyncpa [#allocation5], 0
    %s13 = scalar_lea.sflag [#allocation5], 1
    %14 = vsyncpa %s13, 0
    %15 = vsyncpa [#allocation8], 0
    %s16 = scalar_lea.sflag [#allocation8], 1
    %17 = vsyncpa %s16, 0
    %18 = vsyncpa [#allocation6], 0
    %s19 = scalar_lea.sflag [#allocation6], 1
    %20 = vsyncpa %s19, 0
    %21 = vsyncpa [#allocation11], 0
    %s22 = scalar_lea.sflag [#allocation11], 1
    %23 = vsyncpa %s22, 0
    loop: start=0, step=1, limit=4
    $region2: #{tpu_custom_call.1} parent=1 // loop_pre_header
      _
    $region3: #{tpu_custom_call.1} parent=1 // loop_header
      %s25 = sphi 0, %s29
      %p26 = scmp.ge.s32.totalorder %s25, 4
      %s35 = sphi 0, %s37
      %s38 = sphi 0, %s35
      %s39 = sphi 0, %s38
      %s55 = sphi 0, %s39
      %s61 = sphi 0, %s63
      %s64 = sphi 0, %s61
      %s65 = sphi 0, %s64
      %s81 = sphi 0, %s65
      %s85 = sphi 0, %s85
      %s87 = sphi 0, %s85
      %s88 = sphi 0, %s87
      %s102 = sphi 0, %s88
      %s108 = sphi 0, %s110
      %s111 = sphi 0, %s108
      %s112 = sphi 0, %s111
      %s128 = sphi 0, %s112
      %s134 = sphi 0, %s136
      %s137 = sphi 0, %s134
      %s138 = sphi 0, %s137
      %s154 = sphi 0, %s138
    $region4: #{tpu_custom_call.1} parent=1 // loop_header_branch
      %28 = sbr.rel (%p26) target = $region8
    $region5: #{tpu_custom_call.1} parent=1 // loop_body
      %s30 = ssub.s32 %s25, 1
      %s31 = ssub.s32 %s25, 2
      %s32 = sadd.s32 %s25, 1
      %s33 = ssub.s32 %s25, %s32
      %p34 = scmp.eq.s32.totalorder %s33, 0
      %s36 = sadd.s32 %s35, 1
      %s37 = scalar_select %p34, %s35, %s36
      %p40 = pneg %p34
      %p41 = scmp.eq.s32.totalorder %s25, 1
      %p42 = por %p40, %p41
      %p43 = scmp.ne.s32.totalorder %s35, %s38
      %p44 = scmp.eq.s32.totalorder %s25, 0
      %p45 = por %p43, %p44
      %p46 = scmp.ne.s32.totalorder %s35, %s38
      %p47 = scmp.eq.s32.totalorder %s30, 1
      %p48 = por %p46, %p47
      %p49 = scmp.ne.s32.totalorder %s38, %s39
      %p50 = scmp.eq.s32.totalorder %s30, 0
      %p51 = por %p49, %p50
      %p52 = scmp.ne.s32.totalorder %s38, %s39
      %p53 = scmp.eq.s32.totalorder %s31, 1
      %p54 = por %p52, %p53
      %p56 = scmp.ne.s32.totalorder %s39, %s55
      %p57 = scmp.eq.s32.totalorder %s31, 0
      %p58 = por %p56, %p57
      %s59 = ssub.s32 %s25, %s32
      %p60 = scmp.eq.s32.totalorder %s59, 0
      %s62 = sadd.s32 %s61, 1
      %s63 = scalar_select %p60, %s61, %s62
      %p66 = pneg %p60
      %p67 = scmp.eq.s32.totalorder %s25, 1
      %p68 = por %p66, %p67
      %p69 = scmp.ne.s32.totalorder %s61, %s64
      %p70 = scmp.eq.s32.totalorder %s25, 0
      %p71 = por %p69, %p70
      %p72 = scmp.ne.s32.totalorder %s61, %s64
      %p73 = scmp.eq.s32.totalorder %s30, 1
      %p74 = por %p72, %p73
      %p75 = scmp.ne.s32.totalorder %s64, %s65
      %p76 = scmp.eq.s32.totalorder %s30, 0
      %p77 = por %p75, %p76
      %p78 = scmp.ne.s32.totalorder %s64, %s65
      %p79 = scmp.eq.s32.totalorder %s31, 1
      %p80 = por %p78, %p79
      %p82 = scmp.ne.s32.totalorder %s65, %s81
      %p83 = scmp.eq.s32.totalorder %s31, 0
      %p84 = por %p82, %p83
      %s86 = sadd.s32 %s85, 1
      %p89 = scmp.eq.s32.totalorder %s25, 1
      %p90 = scmp.ne.s32.totalorder %s85, %s87
      %p91 = scmp.eq.s32.totalorder %s25, 0
      %p92 = por %p90, %p91
      %p93 = scmp.ne.s32.totalorder %s85, %s87
      %p94 = scmp.eq.s32.totalorder %s30, 1
      %p95 = por %p93, %p94
      %p96 = scmp.ne.s32.totalorder %s87, %s88
      %p97 = scmp.eq.s32.totalorder %s30, 0
      %p98 = por %p96, %p97
      %p99 = scmp.ne.s32.totalorder %s87, %s88
      %p100 = scmp.eq.s32.totalorder %s31, 1
      %p101 = por %p99, %p100
      %p103 = scmp.ne.s32.totalorder %s88, %s102
      %p104 = scmp.eq.s32.totalorder %s31, 0
      %p105 = por %p103, %p104
      %s106 = ssub.s32 %s25, %s32
      %p107 = scmp.eq.s32.totalorder %s106, 0
      %s109 = sadd.s32 %s108, 1
      %s110 = scalar_select %p107, %s108, %s109
      %p113 = pneg %p107
      %p114 = scmp.eq.s32.totalorder %s25, 1
      %p115 = por %p113, %p114
      %p116 = scmp.ne.s32.totalorder %s108, %s111
      %p117 = scmp.eq.s32.totalorder %s25, 0
      %p118 = por %p116, %p117
      %p119 = scmp.ne.s32.totalorder %s108, %s111
      %p120 = scmp.eq.s32.totalorder %s30, 1
      %p121 = por %p119, %p120
      %p122 = scmp.ne.s32.totalorder %s111, %s112
      %p123 = scmp.eq.s32.totalorder %s30, 0
      %p124 = por %p122, %p123
      %p125 = scmp.ne.s32.totalorder %s111, %s112
      %p126 = scmp.eq.s32.totalorder %s31, 1
      %p127 = por %p125, %p126
      %p129 = scmp.ne.s32.totalorder %s112, %s128
      %p130 = scmp.eq.s32.totalorder %s31, 0
      %p131 = por %p129, %p130
      %s132 = ssub.s32 %s25, %s32
      %p133 = scmp.eq.s32.totalorder %s132, 0
      %s135 = sadd.s32 %s134, 1
      %s136 = scalar_select %p133, %s134, %s135
      %p139 = pneg %p133
      %p140 = scmp.eq.s32.totalorder %s25, 1
      %p141 = por %p139, %p140
      %p142 = scmp.ne.s32.totalorder %s134, %s137
      %p143 = scmp.eq.s32.totalorder %s25, 0
      %p144 = por %p142, %p143
      %p145 = scmp.ne.s32.totalorder %s134, %s137
      %p146 = scmp.eq.s32.totalorder %s30, 1
      %p147 = por %p145, %p146
      %p148 = scmp.ne.s32.totalorder %s137, %s138
      %p149 = scmp.eq.s32.totalorder %s30, 0
      %p150 = por %p148, %p149
      %p151 = scmp.ne.s32.totalorder %s137, %s138
      %p152 = scmp.eq.s32.totalorder %s31, 1
      %p153 = por %p151, %p152
      %p155 = scmp.ne.s32.totalorder %s138, %s154
      %p156 = scmp.eq.s32.totalorder %s31, 0
      %p157 = por %p155, %p156
      %p158 = scmp.le.s32.totalorder 1, %s25
      %p159 = scmp.lt.s32.totalorder %s25, 3
      %p160 = pnand %p158, %p159
      %p161 = pneg %p160
      // Predicated region
      $region9: #{tpu_custom_call.1} parent=5 // pred_check
        _
      $region10: #{tpu_custom_call.1} parent=5 // pred_check_branch
        %163 = sbr.rel (%p160) target = $region12
      $region11: #{tpu_custom_call.1} parent=5 // pred_region
        %s164 = ssub.s32 %s25, 1
        // Predicated region
        $region13: #{tpu_custom_call.1} parent=11 // pred_check
          %p165 = pneg %p98
        $region14: #{tpu_custom_call.1} parent=11 // pred_check_branch
          %167 = sbr.rel (%p165) target = $region16
        $region15: #{tpu_custom_call.1} parent=11 // pred_region
          _
        $region16: #{tpu_custom_call.1} parent=11 // pred_fallthru
          _
      $region12: #{tpu_custom_call.1} parent=5 // pred_fallthru
        _
      %p168 = scmp.lt.s32.totalorder %s25, 2
      // Predicated region
      $region17: #{tpu_custom_call.1} parent=5 // pred_check
        %p169 = pneg %p168
      $region18: #{tpu_custom_call.1} parent=5 // pred_check_branch
        %171 = sbr.rel (%p169) target = $region20
      $region19: #{tpu_custom_call.1} parent=5 // pred_region
        // Predicated region
        $region21: #{tpu_custom_call.1} parent=19 // pred_check
          %p172 = pneg %p45
        $region22: #{tpu_custom_call.1} parent=19 // pred_check_branch
          %174 = sbr.rel (%p172) target = $region24
        $region23: #{tpu_custom_call.1} parent=19 // pred_region
          %s175 = sand.u32 %s35, 1
          %s176 = scalar_lea.sflag [#allocation5], %s175
          %s177 = sand.u32 %s35, 1
          %s178 = smul.addr %s177, 8
          %s179 = scalar_lea.vmem [#allocation4], %s178
          %181 = vsyncadd %s176, 0
          %s182 = smul.addr %s25, 8
          %s183 = scalar_lea.hbm %s1, %s182
          %s185 = sshll.u32 %s183, 4
          %s186 = int_to_ptr.hbm [resolvable:$true] %s185
          %s187 = sshll.u32 %s179, 4
          %s188 = int_to_ptr.vmem [resolvable:$true] %s187
          %190 = dma.hbm_to_vmem [thread:$0]  %s186, 128, %s188, %s176
        $region24: #{tpu_custom_call.1} parent=19 // pred_fallthru
          _
        // Predicated region
        $region25: #{tpu_custom_call.1} parent=19 // pred_check
          %p191 = pneg %p71
        $region26: #{tpu_custom_call.1} parent=19 // pred_check_branch
          %193 = sbr.rel (%p191) target = $region28
        $region27: #{tpu_custom_call.1} parent=19 // pred_region
          %s194 = sand.u32 %s61, 1
          %s195 = scalar_lea.sflag [#allocation8], %s194
          %s196 = sand.u32 %s61, 1
          %s197 = smul.addr %s196, 8
          %s198 = scalar_lea.vmem [#allocation7], %s197
          %200 = vsyncadd %s195, 0
          %s201 = smul.addr %s25, 8
          %s202 = scalar_lea.hbm %s2, %s201
          %s204 = sshll.u32 %s202, 4
          %s205 = int_to_ptr.hbm [resolvable:$true] %s204
          %s206 = sshll.u32 %s198, 4
          %s207 = int_to_ptr.vmem [resolvable:$true] %s206
          %209 = dma.hbm_to_vmem [thread:$0]  %s205, 128, %s207, %s195
        $region28: #{tpu_custom_call.1} parent=19 // pred_fallthru
          _
      $region20: #{tpu_custom_call.1} parent=5 // pred_fallthru
        _
      %p210 = scmp.le.s32.totalorder 1, %s25
      %p211 = scmp.lt.s32.totalorder %s25, 3
      %p212 = pnand %p210, %p211
      %p213 = pneg %p212
      // Predicated region
      $region29: #{tpu_custom_call.1} parent=5 // pred_check
        _
      $region30: #{tpu_custom_call.1} parent=5 // pred_check_branch
        %215 = sbr.rel (%p212) target = $region32
      $region31: #{tpu_custom_call.1} parent=5 // pred_region
        %s216 = ssub.s32 %s25, 1
        %s217 = sand.u32 %s38, 1
        %s218 = scalar_lea.sflag [#allocation5], %s217
        %s219 = sand.u32 %s38, 1
        %s220 = smul.addr %s219, 8
        %s221 = scalar_lea.vmem [#allocation4], %s220
        // Predicated region
        $region33: #{tpu_custom_call.1} parent=31 // pred_check
          %p222 = pneg %p51
        $region34: #{tpu_custom_call.1} parent=31 // pred_check_branch
          %224 = sbr.rel (%p222) target = $region36
        $region35: #{tpu_custom_call.1} parent=31 // pred_region
          %226 = dma.done %s218, 128
        $region36: #{tpu_custom_call.1} parent=31 // pred_fallthru
          _
        %s227 = sand.u32 %s64, 1
        %s228 = scalar_lea.sflag [#allocation8], %s227
        %s229 = sand.u32 %s64, 1
        %s230 = smul.addr %s229, 8
        %s231 = scalar_lea.vmem [#allocation7], %s230
        // Predicated region
        $region37: #{tpu_custom_call.1} parent=31 // pred_check
          %p232 = pneg %p77
        $region38: #{tpu_custom_call.1} parent=31 // pred_check_branch
          %234 = sbr.rel (%p232) target = $region40
        $region39: #{tpu_custom_call.1} parent=31 // pred_region
          %236 = dma.done %s228, 128
        $region40: #{tpu_custom_call.1} parent=31 // pred_fallthru
          _
        %s237 = sand.u32 %s38, 1
        %s238 = scalar_lea.sflag [#allocation5], %s237
        %s239 = sand.u32 %s38, 1
        %s240 = smul.addr %s239, 8
        %s241 = scalar_lea.vmem [#allocation4], %s240
        %p242 = pneg %p51
        %p243 = pneg %p48
        %s244 = sand.u32 %s64, 1
        %s245 = scalar_lea.sflag [#allocation8], %s244
        %s246 = sand.u32 %s64, 1
        %s247 = smul.addr %s246, 8
        %s248 = scalar_lea.vmem [#allocation7], %s247
        %p249 = pneg %p77
        %p250 = pneg %p74
        %p251 = pneg %p98
        %p252 = pneg %p95
        %p253 = pneg %p124
        %p254 = pneg %p121
        %s255 = sand.u32 %s111, 1
        %s256 = scalar_lea.sflag [#allocation6], %s255
        %s257 = sand.u32 %s111, 1
        %s258 = smul.addr %s257, 8
        %s259 = scalar_lea.vmem [#allocation9], %s258
        %p260 = pneg %p150
        %p261 = pneg %p147
        %s262 = sand.u32 %s137, 1
        %s263 = scalar_lea.sflag [#allocation11], %s262
        %s264 = sand.u32 %s137, 1
        %s265 = smul.addr %s264, 8
        %s266 = scalar_lea.vmem [#allocation10], %s265
        %v267 = vld [vmem:[%s221] sm:$0xff]
        %v268 = vld [vmem:[%s231] sm:$0xff]
        %v269 = vadd.f32 %v267, %v268
        %v270 = vmul.f32 %v269, %v269
        %271 = vadd.xlane.f32.xlu0 %v270
        %v272 = vpop.xlane.xlu0 %271
        %v273 = vmul.f32 %v272, 0.0078125
        %v274 = vadd.f32 %v273, 1e-05
        %v275 = vrsqrt.pop %v274
        %v276 = vmul.f32 %v275, %v274
        %v277 = vmul.f32 %v276, %v275
        %v278 = vmul.f32 0.5, %v277
        %v279 = vsub.f32 1.5, %v278
        %v280 = vmul.f32 %v275, %v279
        %vm281 = vweird.f32 %v274
        %vm282 = vweird.f32 %v275
        %vm283 = vmor %vm281, %vm282
        %v284 = vsel %vm283, %v275, %v280
        %v285 = vmul.f32 %v269, %v284
        %v286 = vld [vmem:[%s3] sm:$0x1]
        %v288 = vperm.slane %v286, 0
        %v290 = vmul.f32 %v285, %v288
        %291 = vst [vmem:[%s259] sm:$0xff] %v290
        %292 = vst [vmem:[%s266] sm:$0xff] %v269
        %s293 = sand.u32 %s111, 1
        %s294 = scalar_lea.sflag [#allocation6], %s293
        %s295 = sand.u32 %s111, 1
        %s296 = smul.addr %s295, 8
        %s297 = scalar_lea.vmem [#allocation9], %s296
        %s298 = sand.u32 %s137, 1
        %s299 = scalar_lea.sflag [#allocation11], %s298
        %s300 = sand.u32 %s137, 1
        %s301 = smul.addr %s300, 8
        %s302 = scalar_lea.vmem [#allocation10], %s301
        // Predicated region
        $region41: #{tpu_custom_call.1} parent=31 // pred_check
          %p303 = pneg %p121
        $region42: #{tpu_custom_call.1} parent=31 // pred_check_branch
          %305 = sbr.rel (%p303) target = $region44
        $region43: #{tpu_custom_call.1} parent=31 // pred_region
          %307 = vsyncadd %s294, 0
          %s308 = smul.addr %s30, 8
          %s309 = scalar_lea.hbm %s4, %s308
          %s311 = sshll.u32 %s297, 4
          %s312 = int_to_ptr.vmem [resolvable:$true] %s311
          %s313 = sshll.u32 %s309, 4
          %s314 = int_to_ptr.hbm [resolvable:$true] %s313
          %316 = dma.vmem_to_hbm [thread:$0]  %s312, 128, %s314, %s294
        $region44: #{tpu_custom_call.1} parent=31 // pred_fallthru
          _
        // Predicated region
        $region45: #{tpu_custom_call.1} parent=31 // pred_check
          %p317 = pneg %p147
        $region46: #{tpu_custom_call.1} parent=31 // pred_check_branch
          %319 = sbr.rel (%p317) target = $region48
        $region47: #{tpu_custom_call.1} parent=31 // pred_region
          %321 = vsyncadd %s299, 0
          %s322 = smul.addr %s30, 8
          %s323 = scalar_lea.hbm %s5, %s322
          %s325 = sshll.u32 %s302, 4
          %s326 = int_to_ptr.vmem [resolvable:$true] %s325
          %s327 = sshll.u32 %s323, 4
          %s328 = int_to_ptr.hbm [resolvable:$true] %s327
          %330 = dma.vmem_to_hbm [thread:$0]  %s326, 128, %s328, %s299
        $region48: #{tpu_custom_call.1} parent=31 // pred_fallthru
          _
      $region32: #{tpu_custom_call.1} parent=5 // pred_fallthru
        _
      %p331 = scmp.le.s32.totalorder 2, %s25
      // Predicated region
      $region49: #{tpu_custom_call.1} parent=5 // pred_check
        %p332 = pneg %p331
      $region50: #{tpu_custom_call.1} parent=5 // pred_check_branch
        %334 = sbr.rel (%p332) target = $region52
      $region51: #{tpu_custom_call.1} parent=5 // pred_region
        %s335 = ssub.s32 %s25, 2
        // Predicated region
        $region53: #{tpu_custom_call.1} parent=51 // pred_check
          %p336 = pneg %p127
        $region54: #{tpu_custom_call.1} parent=51 // pred_check_branch
          %338 = sbr.rel (%p336) target = $region56
        $region55: #{tpu_custom_call.1} parent=51 // pred_region
          %s339 = sand.u32 %s112, 1
          %s340 = scalar_lea.sflag [#allocation6], %s339
          %s341 = sand.u32 %s112, 1
          %s342 = smul.addr %s341, 8
          %s343 = scalar_lea.vmem [#allocation9], %s342
          %345 = dma.done %s340, 128
        $region56: #{tpu_custom_call.1} parent=51 // pred_fallthru
          _
        // Predicated region
        $region57: #{tpu_custom_call.1} parent=51 // pred_check
          %p346 = pneg %p153
        $region58: #{tpu_custom_call.1} parent=51 // pred_check_branch
          %348 = sbr.rel (%p346) target = $region60
        $region59: #{tpu_custom_call.1} parent=51 // pred_region
          %s349 = sand.u32 %s138, 1
          %s350 = scalar_lea.sflag [#allocation11], %s349
          %s351 = sand.u32 %s138, 1
          %s352 = smul.addr %s351, 8
          %s353 = scalar_lea.vmem [#allocation10], %s352
          %355 = dma.done %s350, 128
        $region60: #{tpu_custom_call.1} parent=51 // pred_fallthru
          _
      $region52: #{tpu_custom_call.1} parent=5 // pred_fallthru
        _
    $region6: #{tpu_custom_call.1} parent=1 // loop_footer
      %s29 = sadd.s32 1, %s25
    $region7: #{tpu_custom_call.1} parent=1 // loop_footer_branch
      %24 = sbr.rel target = $region3
    $region8: #{tpu_custom_call.1} parent=1 // loop_exit
      _
    %356 = vsyncpa [#allocation5], 1
    %s357 = scalar_lea.sflag [#allocation5], 1
    %358 = vsyncpa %s357, 1
    %359 = vsyncpa [#allocation8], 1
    %s360 = scalar_lea.sflag [#allocation8], 1
    %361 = vsyncpa %s360, 1
    %362 = vsyncpa [#allocation6], 1
    %s363 = scalar_lea.sflag [#allocation6], 1
    %364 = vsyncpa %s363, 1
    %365 = vsyncpa [#allocation11], 1
    %s366 = scalar_lea.sflag [#allocation11], 1
    %367 = vsyncpa %s366, 1

</llo_original>
